<compile_context>
chip_gen: v7x
topology: tpu7x:2x2x1
jax: 0.10.0
libtpu: 0.0.40
codegen_flags: <defaults>
</compile_context>

<pallas_src>
import functools

import jax
import jax.numpy as jnp
from jax import lax
from jax.experimental import pallas as pl
from jax.experimental.pallas import tpu as pltpu


def _round_up(n, m):
    return ((n + m - 1) // m) * m


# ---------------------------------------------------------------------------
# Kernel: one row-block of VectorQuantizerEMA.forward (eval mode).
# ---------------------------------------------------------------------------
def _vq_kernel(x_ref, e_ref, *refs, commitment_cost, total_rows, with_encodings):
    if with_encodings:
        q_ref, enc_ref, stats_ref, ssd_acc, cnt_acc = refs
    else:
        q_ref, stats_ref, ssd_acc, cnt_acc = refs
        enc_ref = None

    pid = pl.program_id(0)
    block_rows = x_ref.shape[0]

    @pl.when(pid == 0)
    def _init():
        ssd_acc[...] = jnp.zeros_like(ssd_acc)
        cnt_acc[...] = jnp.zeros_like(cnt_acc)

    x = x_ref[...]                                   # (rows, D) f32
    e = e_ref[...]                                   # (E, D)    f32
    num_codes = e.shape[0]
    dims = x.shape[1]

    # distances = ||x||^2 + ||e||^2 - 2 x e^T  (the PyTorch expression),
    # computed on lane-dense (rows, E) tiles; contractions on the MXU in f32.
    contract_last = (((1,), (1,)), ((), ()))
    xe = lax.dot_general(x, e, contract_last, preferred_element_type=jnp.float32)
    e_sq = lax.dot_general(jnp.ones((1, dims), jnp.float32), e * e,
                           contract_last, preferred_element_type=jnp.float32)
    x_sq = jnp.sum(x * x, axis=1, keepdims=True)
    d = x_sq + e_sq - 2.0 * xe                       # (rows, E)

    # First-occurrence argmin -> one-hot encodings (VPU/XLU only).
    col = lax.broadcasted_iota(jnp.int32, d.shape, 1)
    d_min = jnp.min(d, axis=1, keepdims=True)
    idx = jnp.min(jnp.where(d == d_min, col, num_codes), axis=1, keepdims=True)
    enc = (col == idx).astype(jnp.float32)           # (rows, E)

    # Codebook lookup: quantized = encodings @ embedding.
    q = jnp.dot(enc, e, preferred_element_type=jnp.float32)   # (rows, D)

    q_ref[...] = q
    if with_encodings:
        enc_ref[...] = enc

    # Masked accumulation (rows past `total_rows` are padding -> contribute 0).
    row = pid * block_rows + lax.broadcasted_iota(jnp.int32, (block_rows, 1), 0)
    valid = (row < total_rows).astype(jnp.float32)   # (rows, 1)
    diff = q - x
    ssd_acc[...] += jnp.sum(valid * jnp.sum(diff * diff, axis=1, keepdims=True),
                            axis=0, keepdims=True)
    cnt_acc[...] += jnp.sum(valid * enc, axis=0, keepdims=True)

    @pl.when(pid == pl.num_programs(0) - 1)
    def _finalize():
        mse = ssd_acc[...] / float(total_rows * dims)            # (1,1)
        loss = commitment_cost * mse                             # (1,1)
        avg = cnt_acc[...] / float(total_rows)                   # (1,E)
        perp = jnp.exp(-jnp.sum(avg * jnp.log(avg + 1e-10),
                                axis=1, keepdims=True))          # (1,1)
        lane = lax.broadcasted_iota(jnp.int32, (1, 2), 1)
        stats_ref[...] = jnp.where(lane == 0, loss, perp)        # (1,2) merged


# ---------------------------------------------------------------------------
# Wrapper: VectorQuantizerEMA.forward (eval).  inputs: (B, D, H, W) NCHW.
# Returns (loss, quantized NCHW, perplexity, encodings), same forward values
# as the PyTorch module.
# ---------------------------------------------------------------------------
def vector_quantizer_ema(inputs, embedding, *, commitment_cost=0.25,
                         decay=0.99, epsilon=1e-5, reset=False,
                         block_rows=None, return_encodings=True):
    # TODO(synk): decay/epsilon/reset only drive the training-mode EMA update
    # and dead-code resampling, which are stateful and not part of this kernel.
    del decay, epsilon, reset

    batch, dims, height, width = inputs.shape
    num_codes, dims2 = embedding.shape
    assert dims == dims2, "embedding_dim mismatch"
    rows = batch * height * width

    flat = inputs.transpose(0, 2, 3, 1).reshape(rows, dims).astype(jnp.float32)

    if block_rows is None:
        block_rows = min(512, _round_up(rows, 8))
    block_rows = max(8, _round_up(block_rows, 8))
    rows_pad = _round_up(rows, block_rows)
    if rows_pad != rows:
        flat = jnp.pad(flat, ((0, rows_pad - rows), (0, 0)))
    n_blocks = rows_pad // block_rows

    out_shape = [jax.ShapeDtypeStruct((rows_pad, dims), jnp.float32)]
    out_specs = [pl.BlockSpec((block_rows, dims), lambda i: (i, 0))]
    if return_encodings:
        out_shape.append(jax.ShapeDtypeStruct((rows_pad, num_codes), jnp.float32))
        out_specs.append(pl.BlockSpec((block_rows, num_codes), lambda i: (i, 0)))
    out_shape.append(jax.ShapeDtypeStruct((1, 2), jnp.float32))
    out_specs.append(pl.BlockSpec((1, 2), lambda i: (0, 0)))

    outs = pl.pallas_call(
        functools.partial(_vq_kernel,
                          commitment_cost=float(commitment_cost),
                          total_rows=rows,
                          with_encodings=return_encodings),
        out_shape=tuple(out_shape),
        grid_spec=pltpu.PrefetchScalarGridSpec(
            num_scalar_prefetch=0,
            grid=(n_blocks,),
            in_specs=[pl.BlockSpec((block_rows, dims), lambda i: (i, 0)),
                      pl.BlockSpec((num_codes, dims), lambda i: (0, 0))],
            out_specs=tuple(out_specs),
            scratch_shapes=[pltpu.VMEM((1, 1), jnp.float32),
                            pltpu.VMEM((1, num_codes), jnp.float32)]),
        # Stats accumulate across the row-block axis -> it must be "arbitrary".
        # TODO(synk): on v7x (2 TensorCores) split rows into an outer "parallel"
        # axis with per-core partial stats combined outside the kernel.
        compiler_params=pltpu.CompilerParams(
            dimension_semantics=("arbitrary",)),
    )(flat, embedding.astype(jnp.float32))

    if return_encodings:
        q, enc, stats = outs
        encodings = enc[:rows]
    else:
        q, stats = outs
        encodings = None

    quantized = q[:rows].reshape(batch, height, width, dims).transpose(0, 3, 1, 2)
    loss = stats[0, 0]
    perplexity = stats[0, 1]
    # Straight-through: forward value of inputs + (quantized - inputs).detach()
    # is exactly `quantized`; gradient routing is out of scope for this kernel.
    return loss, quantized, perplexity, encodings


# ---------------------------------------------------------------------------
# Pure-JAX reference (mirrors the PyTorch eval forward) for a numerical check.
# ---------------------------------------------------------------------------
def _vector_quantizer_ema_ref(inputs, embedding, commitment_cost=0.25):
    batch, dims, height, width = inputs.shape
    num_codes = embedding.shape[0]
    flat = inputs.transpose(0, 2, 3, 1).reshape(-1, dims)
    d = (jnp.sum(flat ** 2, axis=1, keepdims=True)
         + jnp.sum(embedding ** 2, axis=1)
         - 2.0 * flat @ embedding.T)
    idx = jnp.argmin(d, axis=1)
    enc = jax.nn.one_hot(idx, num_codes, dtype=jnp.float32)
    q = enc @ embedding
    loss = commitment_cost * jnp.mean((q - flat) ** 2)
    avg = jnp.mean(enc, axis=0)
    perp = jnp.exp(-jnp.sum(avg * jnp.log(avg + 1e-10)))
    quantized = q.reshape(batch, height, width, dims).transpose(0, 3, 1, 2)
    return loss, quantized, perp, enc


if __name__ == "__main__":
    key = jax.random.PRNGKey(0)
    k_x, k_e = jax.random.split(key)

    # Small shapes consistent with the module: embedding_dim=8, num_embeddings=16.
    B, D, H, W, E = 2, 8, 4, 4, 16
    inputs = jax.random.normal(k_x, (B, D, H, W), jnp.float32)
    embedding = jax.random.normal(k_e, (E, D), jnp.float32)   # weight.data.normal_()

    fwd = jax.jit(functools.partial(vector_quantizer_ema,
                                    commitment_cost=0.25,
                                    block_rows=8,            # grid=(4,): exercises
                                    return_encodings=True))  # accumulate+finalize
    loss, quantized, perplexity, encodings = fwd(inputs, embedding)
    jax.block_until_ready((loss, quantized, perplexity, encodings))

    assert quantized.shape == inputs.shape
    assert encodings.shape == (B * H * W, E)
    assert loss.shape == () and perplexity.shape == ()

    r_loss, r_q, r_perp, r_enc = _vector_quantizer_ema_ref(inputs, embedding, 0.25)
    assert jnp.allclose(loss, r_loss, atol=1e-4, rtol=1e-4)
    assert jnp.allclose(perplexity, r_perp, atol=1e-4, rtol=1e-4)
    assert jnp.allclose(quantized, r_q, atol=1e-4, rtol=1e-4)
    assert jnp.allclose(encodings, r_enc, atol=1e-5)

    print("KERNEL_OK")
</pallas_src>

<mosaic_0001>
module attributes {stable_mosaic.version = 11 : i64} {
  func.func @_vq_kernel(%arg0: i32, %arg1: memref<8x8xf32, #tpu.memory_space<vmem>>, %arg2: memref<16x8xf32, #tpu.memory_space<vmem>>, %arg3: memref<8x8xf32, #tpu.memory_space<vmem>>, %arg4: memref<8x16xf32, #tpu.memory_space<vmem>>, %arg5: memref<1x2xf32, #tpu.memory_space<vmem>>, %arg6: memref<1x1xf32, #tpu.memory_space<vmem>>, %arg7: memref<1x16xf32, #tpu.memory_space<vmem>>) attributes {dimension_semantics = [#tpu.dimension_semantics<arbitrary>], iteration_bounds = array<i64: 4>, scalar_prefetch = 0 : i64, scratch_operands = 2 : i64, tpu.core_type = #tpu.core_type<tc>, window_params = [{transform_indices = @transform_0, window_bounds = array<i64: 8, 8>}, {pipeline_mode = #tpu.pipeline_mode<synchronous>, transform_indices = @transform_1, window_bounds = array<i64: 16, 8>}, {transform_indices = @transform_2, window_bounds = array<i64: 8, 8>}, {transform_indices = @transform_3, window_bounds = array<i64: 8, 16>}, {pipeline_mode = #tpu.pipeline_mode<synchronous>, transform_indices = @transform_4, window_bounds = array<i64: 1, 2>}]} {
    %c0_i32 = arith.constant 0 : i32
    %0 = arith.cmpi eq, %arg0, %c0_i32 : i32
    %1 = arith.extui %0 : i1 to i32
    %c0_i32_0 = arith.constant 0 : i32
    %2 = arith.cmpi ne, %1, %c0_i32_0 : i32
    scf.if %2 {
      %cst_27 = arith.constant 0.000000e+00 : f32
      %62 = vector.broadcast %cst_27 : f32 to vector<1x1xf32>
      %c0_28 = arith.constant 0 : index
      %c0_29 = arith.constant 0 : index
      %63 = vector.load %arg6[%c0_28, %c0_29] : memref<1x1xf32, #tpu.memory_space<vmem>>, vector<1x1xf32>
      tpu.vector_store %arg6[%c0_28, %c0_29], %62 {strides = array<i32>} : memref<1x1xf32, #tpu.memory_space<vmem>>, vector<1x1xf32>,
      %cst_30 = arith.constant 0.000000e+00 : f32
      %64 = vector.broadcast %cst_30 : f32 to vector<1x16xf32>
      %c0_31 = arith.constant 0 : index
      %c0_32 = arith.constant 0 : index
      %65 = vector.load %arg7[%c0_31, %c0_32] : memref<1x16xf32, #tpu.memory_space<vmem>>, vector<1x16xf32>
      tpu.vector_store %arg7[%c0_31, %c0_32], %64 {strides = array<i32>} : memref<1x16xf32, #tpu.memory_space<vmem>>, vector<1x16xf32>,
    } else {
    }
    %c0 = arith.constant 0 : index
    %c0_1 = arith.constant 0 : index
    %3 = vector.load %arg1[%c0, %c0_1] : memref<8x8xf32, #tpu.memory_space<vmem>>, vector<8x8xf32>
    %c0_2 = arith.constant 0 : index
    %c0_3 = arith.constant 0 : index
    %4 = vector.load %arg2[%c0_2, %c0_3] : memref<16x8xf32, #tpu.memory_space<vmem>>, vector<16x8xf32>
    %cst = arith.constant dense<0.000000e+00> : vector<8x16xf32>
    %5 = tpu.matmul %3, %4, %cst {dimension_numbers = #tpu.dot_dimension_numbers<[1], [1], [0], [0], [0, 0, 1, 0], [], []>} : vector<8x8xf32>, vector<16x8xf32>, vector<8x16xf32> -> vector<8x16xf32>
    %cst_4 = arith.constant 1.000000e+00 : f32
    %6 = vector.broadcast %cst_4 : f32 to vector<1x8xf32>
    %7 = arith.mulf %4, %4 : vector<16x8xf32>
    %cst_5 = arith.constant dense<0.000000e+00> : vector<1x16xf32>
    %8 = tpu.matmul %6, %7, %cst_5 {dimension_numbers = #tpu.dot_dimension_numbers<[1], [1], [0], [0], [0, 0, 1, 0], [], []>} : vector<1x8xf32>, vector<16x8xf32>, vector<1x16xf32> -> vector<1x16xf32>
    %9 = arith.mulf %3, %3 : vector<8x8xf32>
    %cst_6 = arith.constant dense<0.000000e+00> : vector<8xf32>
    %10 = vector.multi_reduction <add>, %9, %cst_6 [1] : vector<8x8xf32> to vector<8xf32>
    %11 = vector.shape_cast %10 : vector<8xf32> to vector<8x1xf32>
    %12 = vector.broadcast %11 : vector<8x1xf32> to vector<8x16xf32>
    %13 = vector.broadcast %8 : vector<1x16xf32> to vector<8x16xf32>
    %14 = arith.addf %12, %13 : vector<8x16xf32>
    %cst_7 = arith.constant 2.000000e+00 : f32
    %15 = vector.broadcast %cst_7 : f32 to vector<8x16xf32>
    %16 = arith.mulf %15, %5 : vector<8x16xf32>
    %17 = arith.subf %14, %16 : vector<8x16xf32>
    %18 = tpu.iota {dimensions = array<i32: 1>} : vector<8x16xi32>
    %cst_8 = arith.constant dense<0x7F800000> : vector<8xf32>
    %19 = vector.multi_reduction <minimumf>, %17, %cst_8 [1] : vector<8x16xf32> to vector<8xf32>
    %20 = vector.shape_cast %19 : vector<8xf32> to vector<8x1xf32>
    %21 = vector.broadcast %20 : vector<8x1xf32> to vector<8x16xf32>
    %22 = arith.cmpf oeq, %17, %21 : vector<8x16xf32>
    %c16_i32 = arith.constant 16 : i32
    %23 = vector.broadcast %c16_i32 : i32 to vector<8x16xi32>
    %24 = arith.select %22, %18, %23 : vector<8x16xi1>, vector<8x16xi32>
    %cst_9 = arith.constant dense<2147483647> : vector<8xi32>
    %25 = vector.multi_reduction <minsi>, %24, %cst_9 [1] : vector<8x16xi32> to vector<8xi32>
    %26 = vector.shape_cast %25 : vector<8xi32> to vector<8x1xi32>
    %27 = vector.broadcast %26 : vector<8x1xi32> to vector<8x16xi32>
    %28 = arith.cmpi eq, %18, %27 : vector<8x16xi32>
    %29 = arith.extui %28 : vector<8x16xi1> to vector<8x16xi32>
    %30 = arith.sitofp %29 : vector<8x16xi32> to vector<8x16xf32>
    %cst_10 = arith.constant dense<0.000000e+00> : vector<8x8xf32>
    %31 = tpu.matmul %30, %4, %cst_10 {dimension_numbers = #tpu.dot_dimension_numbers<[1], [0], [0], [1], [0, 0, 1, 1], [], []>} : vector<8x16xf32>, vector<16x8xf32>, vector<8x8xf32> -> vector<8x8xf32>
    %c0_11 = arith.constant 0 : index
    %c0_12 = arith.constant 0 : index
    %32 = vector.load %arg3[%c0_11, %c0_12] : memref<8x8xf32, #tpu.memory_space<vmem>>, vector<8x8xf32>
    tpu.vector_store %arg3[%c0_11, %c0_12], %31 {strides = array<i32>} : memref<8x8xf32, #tpu.memory_space<vmem>>, vector<8x8xf32>,
    %c0_13 = arith.constant 0 : index
    %c0_14 = arith.constant 0 : index
    %33 = vector.load %arg4[%c0_13, %c0_14] : memref<8x16xf32, #tpu.memory_space<vmem>>, vector<8x16xf32>
    tpu.vector_store %arg4[%c0_13, %c0_14], %30 {strides = array<i32>} : memref<8x16xf32, #tpu.memory_space<vmem>>, vector<8x16xf32>,
    %c8_i32 = arith.constant 8 : i32
    %34 = arith.muli %arg0, %c8_i32 : i32
    %35 = tpu.iota {dimensions = array<i32: 0>} : vector<8x1xi32>
    %36 = vector.broadcast %34 : i32 to vector<8x1xi32>
    %37 = arith.addi %36, %35 : vector<8x1xi32>
    %c32_i32 = arith.constant 32 : i32
    %38 = vector.broadcast %c32_i32 : i32 to vector<8x1xi32>
    %39 = arith.cmpi slt, %37, %38 : vector<8x1xi32>
    %40 = arith.extui %39 : vector<8x1xi1> to vector<8x1xi32>
    %41 = arith.sitofp %40 : vector<8x1xi32> to vector<8x1xf32>
    %42 = arith.subf %31, %3 : vector<8x8xf32>
    %c0_15 = arith.constant 0 : index
    %c0_16 = arith.constant 0 : index
    %43 = vector.load %arg6[%c0_15, %c0_16] : memref<1x1xf32, #tpu.memory_space<vmem>>, vector<1x1xf32>
    %44 = arith.mulf %42, %42 : vector<8x8xf32>
    %cst_17 = arith.constant dense<0.000000e+00> : vector<8xf32>
    %45 = vector.multi_reduction <add>, %44, %cst_17 [1] : vector<8x8xf32> to vector<8xf32>
    %46 = vector.shape_cast %45 : vector<8xf32> to vector<8x1xf32>
    %47 = arith.mulf %41, %46 : vector<8x1xf32>
    %cst_18 = arith.constant dense<0.000000e+00> : vector<1xf32>
    %48 = vector.multi_reduction <add>, %47, %cst_18 [0] : vector<8x1xf32> to vector<1xf32>
    %49 = vector.shape_cast %48 : vector<1xf32> to vector<1x1xf32>
    %50 = arith.addf %43, %49 : vector<1x1xf32>
    %c0_19 = arith.constant 0 : index
    %c0_20 = arith.constant 0 : index
    %51 = vector.load %arg6[%c0_19, %c0_20] : memref<1x1xf32, #tpu.memory_space<vmem>>, vector<1x1xf32>
    tpu.vector_store %arg6[%c0_19, %c0_20], %50 {strides = array<i32>} : memref<1x1xf32, #tpu.memory_space<vmem>>, vector<1x1xf32>,
    %c0_21 = arith.constant 0 : index
    %c0_22 = arith.constant 0 : index
    %52 = vector.load %arg7[%c0_21, %c0_22] : memref<1x16xf32, #tpu.memory_space<vmem>>, vector<1x16xf32>
    %53 = vector.broadcast %41 : vector<8x1xf32> to vector<8x16xf32>
    %54 = arith.mulf %53, %30 : vector<8x16xf32>
    %cst_23 = arith.constant dense<0.000000e+00> : vector<16xf32>
    %55 = vector.multi_reduction <add>, %54, %cst_23 [0] : vector<8x16xf32> to vector<16xf32>
    %56 = vector.shape_cast %55 : vector<16xf32> to vector<1x16xf32>
    %57 = arith.addf %52, %56 : vector<1x16xf32>
    %c0_24 = arith.constant 0 : index
    %c0_25 = arith.constant 0 : index
    %58 = vector.load %arg7[%c0_24, %c0_25] : memref<1x16xf32, #tpu.memory_space<vmem>>, vector<1x16xf32>
    tpu.vector_store %arg7[%c0_24, %c0_25], %57 {strides = array<i32>} : memref<1x16xf32, #tpu.memory_space<vmem>>, vector<1x16xf32>,
    %c3_i32 = arith.constant 3 : i32
    %59 = arith.cmpi eq, %arg0, %c3_i32 : i32
    %60 = arith.extui %59 : i1 to i32
    %c0_i32_26 = arith.constant 0 : i32
    %61 = arith.cmpi ne, %60, %c0_i32_26 : i32
    scf.if %61 {
      %c0_27 = arith.constant 0 : index
      %c0_28 = arith.constant 0 : index
      %62 = vector.load %arg6[%c0_27, %c0_28] : memref<1x1xf32, #tpu.memory_space<vmem>>, vector<1x1xf32>
      %cst_29 = arith.constant 2.560000e+02 : f32
      %63 = vector.broadcast %cst_29 : f32 to vector<1x1xf32>
      %64 = arith.divf %62, %63 : vector<1x1xf32>
      %cst_30 = arith.constant 2.500000e-01 : f32
      %65 = vector.broadcast %cst_30 : f32 to vector<1x1xf32>
      %66 = arith.mulf %65, %64 : vector<1x1xf32>
      %c0_31 = arith.constant 0 : index
      %c0_32 = arith.constant 0 : index
      %67 = vector.load %arg7[%c0_31, %c0_32] : memref<1x16xf32, #tpu.memory_space<vmem>>, vector<1x16xf32>
      %cst_33 = arith.constant 3.200000e+01 : f32
      %68 = vector.broadcast %cst_33 : f32 to vector<1x16xf32>
      %69 = arith.divf %67, %68 : vector<1x16xf32>
      %cst_34 = arith.constant 1.000000e-10 : f32
      %70 = vector.broadcast %cst_34 : f32 to vector<1x16xf32>
      %71 = arith.addf %69, %70 : vector<1x16xf32>
      %72 = math.log %71 : vector<1x16xf32>
      %73 = arith.mulf %69, %72 : vector<1x16xf32>
      %cst_35 = arith.constant dense<0.000000e+00> : vector<1xf32>
      %74 = vector.multi_reduction <add>, %73, %cst_35 [1] : vector<1x16xf32> to vector<1xf32>
      %75 = vector.shape_cast %74 : vector<1xf32> to vector<1x1xf32>
      %cst_36 = arith.constant 0.000000e+00 : f32
      %76 = vector.broadcast %cst_36 : f32 to vector<1x1xf32>
      %77 = arith.subf %76, %75 : vector<1x1xf32>
      %78 = math.exp %77 : vector<1x1xf32>
      %79 = tpu.iota {dimensions = array<i32: 1>} : vector<1x2xi32>
      %c0_i32_37 = arith.constant 0 : i32
      %80 = vector.broadcast %c0_i32_37 : i32 to vector<1x2xi32>
      %81 = arith.cmpi eq, %79, %80 : vector<1x2xi32>
      %82 = vector.shape_cast %66 : vector<1x1xf32> to vector<1x1xf32>
      %83 = vector.broadcast %82 : vector<1x1xf32> to vector<1x2xf32>
      %84 = vector.shape_cast %78 : vector<1x1xf32> to vector<1x1xf32>
      %85 = vector.broadcast %84 : vector<1x1xf32> to vector<1x2xf32>
      %86 = arith.select %81, %83, %85 : vector<1x2xi1>, vector<1x2xf32>
      %c0_38 = arith.constant 0 : index
      %c0_39 = arith.constant 0 : index
      %87 = vector.load %arg5[%c0_38, %c0_39] : memref<1x2xf32, #tpu.memory_space<vmem>>, vector<1x2xf32>
      tpu.vector_store %arg5[%c0_38, %c0_39], %86 {strides = array<i32>} : memref<1x2xf32, #tpu.memory_space<vmem>>, vector<1x2xf32>,
    } else {
    }
    return
  }
  func.func @transform_0(%arg0: i32) -> (i32, i32) {
    %c0_i32 = arith.constant 0 : i32
    %c0_i32_0 = arith.constant 0 : i32
    return %arg0, %c0_i32 : i32, i32
  }
  func.func @transform_1(%arg0: i32) -> (i32, i32) {
    %c0_i32 = arith.constant 0 : i32
    %c0_i32_0 = arith.constant 0 : i32
    %c0_i32_1 = arith.constant 0 : i32
    return %c0_i32, %c0_i32_0 : i32, i32
  }
  func.func @transform_2(%arg0: i32) -> (i32, i32) {
    %c0_i32 = arith.constant 0 : i32
    %c0_i32_0 = arith.constant 0 : i32
    return %arg0, %c0_i32 : i32, i32
  }
  func.func @transform_3(%arg0: i32) -> (i32, i32) {
    %c0_i32 = arith.constant 0 : i32
    %c0_i32_0 = arith.constant 0 : i32
    return %arg0, %c0_i32 : i32, i32
  }
  func.func @transform_4(%arg0: i32) -> (i32, i32) {
    %c0_i32 = arith.constant 0 : i32
    %c0_i32_0 = arith.constant 0 : i32
    %c0_i32_1 = arith.constant 0 : i32
    return %c0_i32, %c0_i32_0 : i32, i32
  }
}

</mosaic_0001>

<llo_original>
// kernel: vector_quantizer_ema.1
$region0: #{vector_quantizer_ema.1}
  #allocation0 [shape = 'u32[]', space=smem, size = 0x4, offset = 0x4, fixed_abs, tag = 'smem constant byte address 0x4 - core index']
  #allocation1 [shape = 'u32[144,128]{1,0:T(1,128)}', space=vmem, size = 0x12000, scoped, tag = 'internal scratch']
  #allocation2 [shape = 'f32[1,1]{1,0:T(1,128)}', space=vmem, size = 0x200, scoped, tag = 'scratch operand']
  #allocation3 [shape = 'f32[1,16]{1,0:T(1,128)}', space=vmem, size = 0x200, scoped, tag = 'scratch operand']
  %s0 = inlined_call_operand.hbm [shape: f32[32,8], index: 0, kind: input, shape index: {}]
  %s1 = inlined_call_operand.vmem [shape: f32[16,8], index: 1, kind: input, shape index: {}]
  %s2 = inlined_call_operand.hbm [shape: f32[32,8], index: 2, kind: output, shape index: {0}]
  %s3 = inlined_call_operand.vmem [shape: f32[32,16], index: 3, kind: output, shape index: {1}]
  %s4 = inlined_call_operand.vmem [shape: f32[1,2], index: 4, kind: output, shape index: {2}]
  %5 = xla_tuple %s2, %s3, %s4
  %s6 = sld [smem:[#allocation0]]
  $region69: #{vector_quantizer_ema.1} parent=0
    _
  %s8 = ssub.s32 1, %s6
  %s9 = scalar_select 0, %s8, %s6
  $region1: #{vector_quantizer_ema.1} parent=0
    #allocation4 [shape = 'u8[8192]{0}', space=vmem, size = 0x2000, scoped, tag = 'input window, operand 0']
    #allocation5 [shape = 's32[2]{0}', space=sflag, size = 0x8, scoped, tag = 'scoped memory for vector_quantizer_ema.1']
    #allocation6 [shape = 's32[2]{0}', space=sflag, size = 0x8, scoped, tag = 'scoped memory for vector_quantizer_ema.1']
    #allocation7 [shape = 'u8[8192]{0}', space=vmem, size = 0x2000, scoped, tag = 'output window, operand 0']
    %10 = vsyncpa [#allocation5], 0
    %s11 = scalar_lea.sflag [#allocation5], 1
    %12 = vsyncpa %s11, 0
    %13 = vsyncpa [#allocation6], 0
    %s14 = scalar_lea.sflag [#allocation6], 1
    %15 = vsyncpa %s14, 0
    loop: start=0, step=1, limit=6
    $region2: #{vector_quantizer_ema.1} parent=1 // loop_pre_header
      _
    $region3: #{vector_quantizer_ema.1} parent=1 // loop_header
      %s17 = sphi 0, %s21
      %p18 = scmp.ge.s32.totalorder %s17, 6
      %s27 = sphi 0, %s29
      %s30 = sphi 0, %s27
      %s31 = sphi 0, %s30
      %s47 = sphi 0, %s31
      %s51 = sphi 0, %s51
      %s53 = sphi 0, %s51
      %s54 = sphi 0, %s53
      %s68 = sphi 0, %s54
      %s74 = sphi 0, %s76
      %s77 = sphi 0, %s74
      %s78 = sphi 0, %s77
      %s94 = sphi 0, %s78
      %s100 = sphi 0, %s102
      %s103 = sphi 0, %s100
      %s104 = sphi 0, %s103
      %s120 = sphi 0, %s104
      %s124 = sphi 0, %s124
      %s126 = sphi 0, %s124
      %s127 = sphi 0, %s126
      %s141 = sphi 0, %s127
    $region4: #{vector_quantizer_ema.1} parent=1 // loop_header_branch
      %20 = sbr.rel (%p18) target = $region8
    $region5: #{vector_quantizer_ema.1} parent=1 // loop_body
      %s22 = ssub.s32 %s17, 1
      %s23 = ssub.s32 %s17, 2
      %s24 = sadd.s32 %s17, 1
      %s25 = ssub.s32 %s17, %s24
      %p26 = scmp.eq.s32.totalorder %s25, 0
      %s28 = sadd.s32 %s27, 1
      %s29 = scalar_select %p26, %s27, %s28
      %p32 = pneg %p26
      %p33 = scmp.eq.s32.totalorder %s17, 3
      %p34 = por %p32, %p33
      %p35 = scmp.ne.s32.totalorder %s27, %s30
      %p36 = scmp.eq.s32.totalorder %s17, 0
      %p37 = por %p35, %p36
      %p38 = scmp.ne.s32.totalorder %s27, %s30
      %p39 = scmp.eq.s32.totalorder %s22, 3
      %p40 = por %p38, %p39
      %p41 = scmp.ne.s32.totalorder %s30, %s31
      %p42 = scmp.eq.s32.totalorder %s22, 0
      %p43 = por %p41, %p42
      %p44 = scmp.ne.s32.totalorder %s30, %s31
      %p45 = scmp.eq.s32.totalorder %s23, 3
      %p46 = por %p44, %p45
      %p48 = scmp.ne.s32.totalorder %s31, %s47
      %p49 = scmp.eq.s32.totalorder %s23, 0
      %p50 = por %p48, %p49
      %s52 = sadd.s32 %s51, 1
      %p55 = scmp.eq.s32.totalorder %s17, 3
      %p56 = scmp.ne.s32.totalorder %s51, %s53
      %p57 = scmp.eq.s32.totalorder %s17, 0
      %p58 = por %p56, %p57
      %p59 = scmp.ne.s32.totalorder %s51, %s53
      %p60 = scmp.eq.s32.totalorder %s22, 3
      %p61 = por %p59, %p60
      %p62 = scmp.ne.s32.totalorder %s53, %s54
      %p63 = scmp.eq.s32.totalorder %s22, 0
      %p64 = por %p62, %p63
      %p65 = scmp.ne.s32.totalorder %s53, %s54
      %p66 = scmp.eq.s32.totalorder %s23, 3
      %p67 = por %p65, %p66
      %p69 = scmp.ne.s32.totalorder %s54, %s68
      %p70 = scmp.eq.s32.totalorder %s23, 0
      %p71 = por %p69, %p70
      %s72 = ssub.s32 %s17, %s24
      %p73 = scmp.eq.s32.totalorder %s72, 0
      %s75 = sadd.s32 %s74, 1
      %s76 = scalar_select %p73, %s74, %s75
      %p79 = pneg %p73
      %p80 = scmp.eq.s32.totalorder %s17, 3
      %p81 = por %p79, %p80
      %p82 = scmp.ne.s32.totalorder %s74, %s77
      %p83 = scmp.eq.s32.totalorder %s17, 0
      %p84 = por %p82, %p83
      %p85 = scmp.ne.s32.totalorder %s74, %s77
      %p86 = scmp.eq.s32.totalorder %s22, 3
      %p87 = por %p85, %p86
      %p88 = scmp.ne.s32.totalorder %s77, %s78
      %p89 = scmp.eq.s32.totalorder %s22, 0
      %p90 = por %p88, %p89
      %p91 = scmp.ne.s32.totalorder %s77, %s78
      %p92 = scmp.eq.s32.totalorder %s23, 3
      %p93 = por %p91, %p92
      %p95 = scmp.ne.s32.totalorder %s78, %s94
      %p96 = scmp.eq.s32.totalorder %s23, 0
      %p97 = por %p95, %p96
      %s98 = ssub.s32 %s17, %s24
      %p99 = scmp.eq.s32.totalorder %s98, 0
      %s101 = sadd.s32 %s100, 1
      %s102 = scalar_select %p99, %s100, %s101
      %p105 = pneg %p99
      %p106 = scmp.eq.s32.totalorder %s17, 3
      %p107 = por %p105, %p106
      %p108 = scmp.ne.s32.totalorder %s100, %s103
      %p109 = scmp.eq.s32.totalorder %s17, 0
      %p110 = por %p108, %p109
      %p111 = scmp.ne.s32.totalorder %s100, %s103
      %p112 = scmp.eq.s32.totalorder %s22, 3
      %p113 = por %p111, %p112
      %p114 = scmp.ne.s32.totalorder %s103, %s104
      %p115 = scmp.eq.s32.totalorder %s22, 0
      %p116 = por %p114, %p115
      %p117 = scmp.ne.s32.totalorder %s103, %s104
      %p118 = scmp.eq.s32.totalorder %s23, 3
      %p119 = por %p117, %p118
      %p121 = scmp.ne.s32.totalorder %s104, %s120
      %p122 = scmp.eq.s32.totalorder %s23, 0
      %p123 = por %p121, %p122
      %s125 = sadd.s32 %s124, 1
      %p128 = scmp.eq.s32.totalorder %s17, 3
      %p129 = scmp.ne.s32.totalorder %s124, %s126
      %p130 = scmp.eq.s32.totalorder %s17, 0
      %p131 = por %p129, %p130
      %p132 = scmp.ne.s32.totalorder %s124, %s126
      %p133 = scmp.eq.s32.totalorder %s22, 3
      %p134 = por %p132, %p133
      %p135 = scmp.ne.s32.totalorder %s126, %s127
      %p136 = scmp.eq.s32.totalorder %s22, 0
      %p137 = por %p135, %p136
      %p138 = scmp.ne.s32.totalorder %s126, %s127
      %p139 = scmp.eq.s32.totalorder %s23, 3
      %p140 = por %p138, %p139
      %p142 = scmp.ne.s32.totalorder %s127, %s141
      %p143 = scmp.eq.s32.totalorder %s23, 0
      %p144 = por %p142, %p143
      %p145 = scmp.le.s32.totalorder 1, %s17
      %p146 = scmp.lt.s32.totalorder %s17, 5
      %p147 = pnand %p145, %p146
      %p148 = pneg %p147
      // Predicated region
      $region9: #{vector_quantizer_ema.1} parent=5 // pred_check
        _
      $region10: #{vector_quantizer_ema.1} parent=5 // pred_check_branch
        %150 = sbr.rel (%p147) target = $region12
      $region11: #{vector_quantizer_ema.1} parent=5 // pred_region
        %s151 = ssub.s32 %s17, 1
        // Predicated region
        $region13: #{vector_quantizer_ema.1} parent=11 // pred_check
          %p152 = pneg %p64
        $region14: #{vector_quantizer_ema.1} parent=11 // pred_check_branch
          %154 = sbr.rel (%p152) target = $region16
        $region15: #{vector_quantizer_ema.1} parent=11 // pred_region
          _
        $region16: #{vector_quantizer_ema.1} parent=11 // pred_fallthru
          _
      $region12: #{vector_quantizer_ema.1} parent=5 // pred_fallthru
        _
      %p155 = scmp.lt.s32.totalorder %s17, 4
      // Predicated region
      $region17: #{vector_quantizer_ema.1} parent=5 // pred_check
        %p156 = pneg %p155
      $region18: #{vector_quantizer_ema.1} parent=5 // pred_check_branch
        %158 = sbr.rel (%p156) target = $region20
      $region19: #{vector_quantizer_ema.1} parent=5 // pred_region
        // Predicated region
        $region21: #{vector_quantizer_ema.1} parent=19 // pred_check
          %p159 = pneg %p37
        $region22: #{vector_quantizer_ema.1} parent=19 // pred_check_branch
          %161 = sbr.rel (%p159) target = $region24
        $region23: #{vector_quantizer_ema.1} parent=19 // pred_region
          %s162 = sand.u32 %s27, 1
          %s163 = scalar_lea.sflag [#allocation5], %s162
          %s164 = sand.u32 %s27, 1
          %s165 = smul.addr %s164, 8
          %s166 = scalar_lea.vmem [#allocation4], %s165
          %s168 = ssub.s32 128, 128
          %169 = vsyncadd %s163, %s168
          %s170 = smul.addr %s17, 128
          %s171 = scalar_lea.hbm %s0, %s170
          %s173 = sshll.u32 %s166, 4
          %s174 = int_to_ptr.vmem [resolvable:$true] %s173
          %176 = dma.hbm_to_vmem [thread:$0]  %s171, 128, %s174, %s163
        $region24: #{vector_quantizer_ema.1} parent=19 // pred_fallthru
          _
      $region20: #{vector_quantizer_ema.1} parent=5 // pred_fallthru
        _
      %p177 = scmp.le.s32.totalorder 1, %s17
      %p178 = scmp.lt.s32.totalorder %s17, 5
      %p179 = pnand %p177, %p178
      %p180 = pneg %p179
      // Predicated region
      $region25: #{vector_quantizer_ema.1} parent=5 // pred_check
        _
      $region26: #{vector_quantizer_ema.1} parent=5 // pred_check_branch
        %182 = sbr.rel (%p179) target = $region28
      $region27: #{vector_quantizer_ema.1} parent=5 // pred_region
        %s183 = ssub.s32 %s17, 1
        %s184 = sand.u32 %s30, 1
        %s185 = scalar_lea.sflag [#allocation5], %s184
        %s186 = sand.u32 %s30, 1
        %s187 = smul.addr %s186, 8
        %s188 = scalar_lea.vmem [#allocation4], %s187
        // Predicated region
        $region29: #{vector_quantizer_ema.1} parent=27 // pred_check
          %p189 = pneg %p43
        $region30: #{vector_quantizer_ema.1} parent=27 // pred_check_branch
          %191 = sbr.rel (%p189) target = $region32
        $region31: #{vector_quantizer_ema.1} parent=27 // pred_region
          %192 = dma.done %s185, 128
        $region32: #{vector_quantizer_ema.1} parent=27 // pred_fallthru
          _
        %s193 = sand.u32 %s30, 1
        %s194 = scalar_lea.sflag [#allocation5], %s193
        %s195 = sand.u32 %s30, 1
        %s196 = smul.addr %s195, 8
        %s197 = scalar_lea.vmem [#allocation4], %s196
        %p198 = pneg %p43
        %p199 = pneg %p40
        %p200 = pneg %p64
        %p201 = pneg %p61
        %p202 = pneg %p90
        %p203 = pneg %p87
        %s204 = sand.u32 %s77, 1
        %s205 = scalar_lea.sflag [#allocation6], %s204
        %s206 = sand.u32 %s77, 1
        %s207 = smul.addr %s206, 8
        %s208 = scalar_lea.vmem [#allocation7], %s207
        %p209 = pneg %p116
        %p210 = pneg %p113
        %p211 = scmp.lt.s32.totalorder %s22, 3
        %s212 = scalar_select %p211, %s22, 3
        %s213 = smul.addr %s212, 8
        %s214 = scalar_lea.vmem %s3, %s213
        %p215 = pneg %p137
        %p216 = pneg %p134
        %p217 = scmp.lt.s32.totalorder %s22, 3
        %s218 = scalar_select %p217, %s22, 3
        %s219 = smul.addr %s218, 8
        %s220 = scalar_lea.vmem %s3, %s219
        %p221 = scmp.eq.s32.totalorder %s22, 0
        // Predicated region
        $region33: #{vector_quantizer_ema.1} parent=27 // pred_check
          %p222 = pneg %p221
        $region34: #{vector_quantizer_ema.1} parent=27 // pred_check_branch
          %224 = sbr.rel (%p222) target = $region36
        $region35: #{vector_quantizer_ema.1} parent=27 // pred_region
          %vm225 = vcmask 0
          %226 = vst.msk [vmem:[#allocation2] sm:$0x1] %vm225, 0.0
          %vm227 = vcmask 122880
          %228 = vst.msk [vmem:[#allocation3] sm:$0x1] %vm227, 0.0
        $region36: #{vector_quantizer_ema.1} parent=27 // pred_fallthru
          _
        %v229 = vld [vmem:[%s188] sm:$0xff]
        %v230 = vld [vmem:[%s1] sm:$0xff]
        %v231 = vld [vmem:[%s1 + $0x8] sm:$0xff]
        %vm232 = vcmask 64512
        %v234 = vsel %vm232, %v229, 0
        %v237 = vsel %vm232, %v230, 0
        %v240 = vsel %vm232, %v231, 0
        %242 = vmatprep.subr.mxu0 0.0
        %243 = vmatpush1.xpose.msra.mxu0 %v237
        %244 = vmatprep.subr.mxu0 0.0
        %245 = vmatpush1.xpose.msra.mxu0 %v240
        %246 = vmatprep.subr.mxu0 0.0
        %247 = vmatpush1.xpose.msra.mxu0 0.0
        %248 = vmatprep.subr.mxu0 0.0
        %249 = vmatpush1.xpose.msra.mxu0 0.0
        %250 = vmatprep.subr.mxu0 0.0
        %251 = vmatpush1.xpose.msra.mxu0 0.0
        %252 = vmatprep.subr.mxu0 0.0
        %253 = vmatpush1.xpose.msra.mxu0 0.0
        %254 = vmatprep.subr.mxu0 0.0
        %255 = vmatpush1.xpose.msra.mxu0 0.0
        %256 = vmatprep.subr.mxu0 0.0
        %257 = vmatpush1.xpose.msra.mxu0 0.0
        %258 = vmatprep.subr.mxu0 0.0
        %259 = vmatpush1.xpose.msra.mxu0 0.0
        %260 = vmatprep.subr.mxu0 0.0
        %261 = vmatpush1.xpose.msra.mxu0 0.0
        %262 = vmatprep.subr.mxu0 0.0
        %263 = vmatpush1.xpose.msra.mxu0 0.0
        %264 = vmatprep.subr.mxu0 0.0
        %265 = vmatpush1.xpose.msra.mxu0 0.0
        %266 = vmatprep.subr.mxu0 0.0
        %267 = vmatpush1.xpose.msra.mxu0 0.0
        %268 = vmatprep.subr.mxu0 0.0
        %269 = vmatpush1.xpose.msra.mxu0 0.0
        %270 = vmatprep.subr.mxu0 0.0
        %271 = vmatpush1.xpose.msra.mxu0 0.0
        %272 = vmatprep.subr.mxu0 0.0
        %273 = vmatpush1.xpose.msra.mxu0 0.0
        %274 = vmatprep.subr.mxu0 0.0
        %275 = vmatpush1.xpose.msra.mxu0 0.0
        %276 = vmatprep.subr.mxu0 0.0
        %277 = vmatpush1.xpose.msra.mxu0 0.0
        %278 = vmatprep.subr.mxu0 0.0
        %279 = vmatpush1.xpose.msra.mxu0 0.0
        %280 = vmatprep.subr.mxu0 0.0
        %281 = vmatpush1.xpose.msra.mxu0 0.0
        %282 = vmatprep.subr.mxu0 0.0
        %283 = vmatpush1.xpose.msra.mxu0 0.0
        %284 = vmatprep.subr.mxu0 0.0
        %285 = vmatpush1.xpose.msra.mxu0 0.0
        %286 = vmatprep.subr.mxu0 0.0
        %287 = vmatpush1.xpose.msra.mxu0 0.0
        %288 = vmatprep.subr.mxu0 0.0
        %289 = vmatpush1.xpose.msra.mxu0 0.0
        %290 = vmatprep.subr.mxu0 0.0
        %291 = vmatpush1.xpose.msra.mxu0 0.0
        %292 = vmatprep.subr.mxu0 0.0
        %293 = vmatpush1.xpose.msra.mxu0 0.0
        %294 = vmatprep.subr.mxu0 0.0
        %295 = vmatpush1.xpose.msra.mxu0 0.0
        %296 = vmatprep.subr.mxu0 0.0
        %297 = vmatpush1.xpose.msra.mxu0 0.0
        %298 = vmatprep.subr.mxu0 0.0
        %299 = vmatpush1.xpose.msra.mxu0 0.0
        %300 = vmatprep.subr.mxu0 0.0
        %301 = vmatpush1.xpose.msra.mxu0 0.0
        %302 = vmatprep.subr.mxu0 0.0
        %303 = vmatpush1.xpose.msra.mxu0 0.0
        %304 = vmatprep.subr.mxu0 0.0
        %305 = vmatpush1.xpose.msra.mxu0 0.0
        %306 = vmatprep.mubr.f32.mxu0 0.0
        %307 = vmatmul.mubr.f32.gmra.mrb[0].mxu0 %v234
        %v308 = vpop.f32.mrb[0].mxu0
        %v309 = vadd.f32 0.0, %v308
        %v310 = vpop.f32.mrb[0].mxu0
        %311 = vdwg.mxu0
        %v312 = vmul.f32 %v230, %v230
        %v313 = vmul.f32 %v231, %v231
        %v315 = vsel %vm232, 1.0, 0
        %v318 = vsel %vm232, %v312, 0
        %v321 = vsel %vm232, %v313, 0
        %323 = vmatprep.subr.mxu0 0.0
        %324 = vmatpush1.xpose.msra.mxu0 %v318
        %325 = vmatprep.subr.mxu0 0.0
        %326 = vmatpush1.xpose.msra.mxu0 %v321
        %327 = vmatprep.subr.mxu0 0.0
        %328 = vmatpush1.xpose.msra.mxu0 0.0
        %329 = vmatprep.subr.mxu0 0.0
        %330 = vmatpush1.xpose.msra.mxu0 0.0
        %331 = vmatprep.subr.mxu0 0.0
        %332 = vmatpush1.xpose.msra.mxu0 0.0
        %333 = vmatprep.subr.mxu0 0.0
        %334 = vmatpush1.xpose.msra.mxu0 0.0
        %335 = vmatprep.subr.mxu0 0.0
        %336 = vmatpush1.xpose.msra.mxu0 0.0
        %337 = vmatprep.subr.mxu0 0.0
        %338 = vmatpush1.xpose.msra.mxu0 0.0
        %339 = vmatprep.subr.mxu0 0.0
        %340 = vmatpush1.xpose.msra.mxu0 0.0
        %341 = vmatprep.subr.mxu0 0.0
        %342 = vmatpush1.xpose.msra.mxu0 0.0
        %343 = vmatprep.subr.mxu0 0.0
        %344 = vmatpush1.xpose.msra.mxu0 0.0
        %345 = vmatprep.subr.mxu0 0.0
        %346 = vmatpush1.xpose.msra.mxu0 0.0
        %347 = vmatprep.subr.mxu0 0.0
        %348 = vmatpush1.xpose.msra.mxu0 0.0
        %349 = vmatprep.subr.mxu0 0.0
        %350 = vmatpush1.xpose.msra.mxu0 0.0
        %351 = vmatprep.subr.mxu0 0.0
        %352 = vmatpush1.xpose.msra.mxu0 0.0
        %353 = vmatprep.subr.mxu0 0.0
        %354 = vmatpush1.xpose.msra.mxu0 0.0
        %355 = vmatprep.subr.mxu0 0.0
        %356 = vmatpush1.xpose.msra.mxu0 0.0
        %357 = vmatprep.subr.mxu0 0.0
        %358 = vmatpush1.xpose.msra.mxu0 0.0
        %359 = vmatprep.subr.mxu0 0.0
        %360 = vmatpush1.xpose.msra.mxu0 0.0
        %361 = vmatprep.subr.mxu0 0.0
        %362 = vmatpush1.xpose.msra.mxu0 0.0
        %363 = vmatprep.subr.mxu0 0.0
        %364 = vmatpush1.xpose.msra.mxu0 0.0
        %365 = vmatprep.subr.mxu0 0.0
        %366 = vmatpush1.xpose.msra.mxu0 0.0
        %367 = vmatprep.subr.mxu0 0.0
        %368 = vmatpush1.xpose.msra.mxu0 0.0
        %369 = vmatprep.subr.mxu0 0.0
        %370 = vmatpush1.xpose.msra.mxu0 0.0
        %371 = vmatprep.subr.mxu0 0.0
        %372 = vmatpush1.xpose.msra.mxu0 0.0
        %373 = vmatprep.subr.mxu0 0.0
        %374 = vmatpush1.xpose.msra.mxu0 0.0
        %375 = vmatprep.subr.mxu0 0.0
        %376 = vmatpush1.xpose.msra.mxu0 0.0
        %377 = vmatprep.subr.mxu0 0.0
        %378 = vmatpush1.xpose.msra.mxu0 0.0
        %379 = vmatprep.subr.mxu0 0.0
        %380 = vmatpush1.xpose.msra.mxu0 0.0
        %381 = vmatprep.subr.mxu0 0.0
        %382 = vmatpush1.xpose.msra.mxu0 0.0
        %383 = vmatprep.subr.mxu0 0.0
        %384 = vmatpush1.xpose.msra.mxu0 0.0
        %385 = vmatprep.subr.mxu0 0.0
        %386 = vmatpush1.xpose.msra.mxu0 0.0
        %387 = vmatprep.mubr.f32.mxu0 0.0
        %388 = vmatmul.mubr.f32.gmra.mrb[0].mxu0 %v315
        %v389 = vpop.f32.mrb[0].mxu0
        %v390 = vadd.f32 0.0, %v389
        %v391 = vpop.f32.mrb[0].mxu0
        %392 = vdwg.mxu0
        %v393 = vmul.f32 %v229, %v229
        %v394 = vsel %vm232, %v393, 0.0
        %395 = vadd.xlane.f32.xlu0 %v394
        %v396 = vpop.xlane.xlu0 %395
        %v397 = vlaneseq
        %v398 = vshrl.u32 %v397, 7
        %v399 = vsub.s32 0, %v398
        %v400 = vrot.slane %v390, %v399
        %v401 = vadd.f32 %v396, %v400
        %v402 = vmul.f32 %v309, 2.0
        %v403 = vsub.f32 %v401, %v402
        %v404 = vlaneseq
        %v405 = vand.u32 %v404, 127
        %vm406 = vcmask 130048
        %v407 = vsel %vm406, %v403, inf
        %408 = vmin.xlane.f32.xlu0 %v407
        %v409 = vpop.xlane.xlu0 %408
        %vm410 = vcmp.eq.f32.partialorder %v403, %v409
        %v411 = vsel %vm410, %v405, 16
        %v412 = vsel %vm406, %v411, 2147483647
        %v413 = vand.u32 %v412, 65535
        %v414 = vshra.s32 %v412, 16
        %v415 = vcvt.s32.f32 %v413
        %v416 = vcvt.s32.f32 %v414
        %417 = vmin.xlane.f32.xlu0 %v416
        %v418 = vpop.xlane.xlu0 %417
        %vm419 = vcmp.eq.f32.partialorder %v416, %v418
        %v420 = vsel %vm419, %v415, inf
        %421 = vmin.xlane.f32.xlu0 %v420
        %v422 = vpop.xlane.xlu0 %421
        %v423 = vcvt.f32.s32 %v422
        %v424 = vcvt.f32.s32 %v418
        %v425 = vshll.u32 %v424, 16
        %v426 = vadd.s32 %v425, %v423
        %vm427 = vcmp.eq.s32.totalorder %v405, %v426
        %v428 = vsel %vm427, 1, 0
        %v429 = vcvt.s32.f32 %v428
        %v431 = vsel %vm406, %v429, 0
        %433 = vmatprep.subr.mxu0 0.0
        %434 = vmatpush1.msra.mxu0 %v230
        %435 = vmatprep.subr.mxu0 0.0
        %436 = vmatpush1.msra.mxu0 %v231
        %437 = vmatprep.subr.mxu0 0.0
        %438 = vmatpush1.msra.mxu0 0.0
        %439 = vmatprep.subr.mxu0 0.0
        %440 = vmatpush1.msra.mxu0 0.0
        %441 = vmatprep.subr.mxu0 0.0
        %442 = vmatpush1.msra.mxu0 0.0
        %443 = vmatprep.subr.mxu0 0.0
        %444 = vmatpush1.msra.mxu0 0.0
        %445 = vmatprep.subr.mxu0 0.0
        %446 = vmatpush1.msra.mxu0 0.0
        %447 = vmatprep.subr.mxu0 0.0
        %448 = vmatpush1.msra.mxu0 0.0
        %449 = vmatprep.subr.mxu0 0.0
        %450 = vmatpush1.msra.mxu0 0.0
        %451 = vmatprep.subr.mxu0 0.0
        %452 = vmatpush1.msra.mxu0 0.0
        %453 = vmatprep.subr.mxu0 0.0
        %454 = vmatpush1.msra.mxu0 0.0
        %455 = vmatprep.subr.mxu0 0.0
        %456 = vmatpush1.msra.mxu0 0.0
        %457 = vmatprep.subr.mxu0 0.0
        %458 = vmatpush1.msra.mxu0 0.0
        %459 = vmatprep.subr.mxu0 0.0
        %460 = vmatpush1.msra.mxu0 0.0
        %461 = vmatprep.subr.mxu0 0.0
        %462 = vmatpush1.msra.mxu0 0.0
        %463 = vmatprep.subr.mxu0 0.0
        %464 = vmatpush1.msra.mxu0 0.0
        %465 = vmatprep.subr.mxu0 0.0
        %466 = vmatpush1.msra.mxu0 0.0
        %467 = vmatprep.subr.mxu0 0.0
        %468 = vmatpush1.msra.mxu0 0.0
        %469 = vmatprep.subr.mxu0 0.0
        %470 = vmatpush1.msra.mxu0 0.0
        %471 = vmatprep.subr.mxu0 0.0
        %472 = vmatpush1.msra.mxu0 0.0
        %473 = vmatprep.subr.mxu0 0.0
        %474 = vmatpush1.msra.mxu0 0.0
        %475 = vmatprep.subr.mxu0 0.0
        %476 = vmatpush1.msra.mxu0 0.0
        %477 = vmatprep.subr.mxu0 0.0
        %478 = vmatpush1.msra.mxu0 0.0
        %479 = vmatprep.subr.mxu0 0.0
        %480 = vmatpush1.msra.mxu0 0.0
        %481 = vmatprep.subr.mxu0 0.0
        %482 = vmatpush1.msra.mxu0 0.0
        %483 = vmatprep.subr.mxu0 0.0
        %484 = vmatpush1.msra.mxu0 0.0
        %485 = vmatprep.subr.mxu0 0.0
        %486 = vmatpush1.msra.mxu0 0.0
        %487 = vmatprep.subr.mxu0 0.0
        %488 = vmatpush1.msra.mxu0 0.0
        %489 = vmatprep.subr.mxu0 0.0
        %490 = vmatpush1.msra.mxu0 0.0
        %491 = vmatprep.subr.mxu0 0.0
        %492 = vmatpush1.msra.mxu0 0.0
        %493 = vmatprep.subr.mxu0 0.0
        %494 = vmatpush1.msra.mxu0 0.0
        %495 = vmatprep.subr.mxu0 0.0
        %496 = vmatpush1.msra.mxu0 0.0
        %497 = vmatprep.mubr.f32.mxu0 0.0
        %498 = vmatmul.mubr.f32.gmra.mrb[0].mxu0 %v431
        %v499 = vpop.f32.mrb[0].mxu0
        %v500 = vadd.f32 0.0, %v499
        %v501 = vpop.f32.mrb[0].mxu0
        %502 = vdwg.mxu0
        %503 = vst.msk [vmem:[%s208] sm:$0xff] %vm232, %v500
        %504 = vst.msk [vmem:[%s220] sm:$0xff] %vm406, %v429
        %s505 = smul.u32 %s22, 8
        %v506 = vlaneseq
        %v507 = vshrl.u32 %v506, 7
        %v508 = vstv %s505
        %v509 = vadd.s32 %v508, %v507
        %vm510 = vcmp.lt.s32.totalorder %v509, 32
        %v511 = vsel %vm510, 1, 0
        %v512 = vcvt.s32.f32 %v511
        %v513 = vsub.f32 %v500, %v229
        %v514 = vld [vmem:[#allocation2] sm:$0x1]
        %v515 = vmul.f32 %v513, %v513
        %v516 = vsel %vm232, %v515, 0.0
        %517 = vadd.xlane.f32.xlu0 %v516
        %v518 = vpop.xlane.xlu0 %517
        %v519 = vmul.f32 %v512, %v518
        %v520 = vrot.slane %v519, 4
        %v521 = vadd.f32 %v519, %v520
        %v522 = vrot.slane %v521, 2
        %v523 = vadd.f32 %v521, %v522
        %v524 = vrot.slane %v523, 1
        %v525 = vadd.f32 %v523, %v524
        %v526 = vadd.f32 %v514, %v525
        %vm527 = vcmask 0
        %528 = vst.msk [vmem:[#allocation2] sm:$0x1] %vm527, %v526
        %v529 = vld [vmem:[#allocation3] sm:$0x1]
        %v530 = vmul.f32 %v512, %v429
        %v531 = vsel %vm406, %v530, 0.0
        %v532 = vrot.slane %v531, 4
        %v533 = vadd.f32 %v531, %v532
        %v534 = vrot.slane %v533, 2
        %v535 = vadd.f32 %v533, %v534
        %v536 = vrot.slane %v535, 1
        %v537 = vadd.f32 %v535, %v536
        %v538 = vadd.f32 %v529, %v537
        %vm539 = vcmask 122880
        %540 = vst.msk [vmem:[#allocation3] sm:$0x1] %vm539, %v538
        %p541 = scmp.eq.s32.totalorder %s22, 3
        // Predicated region
        $region37: #{vector_quantizer_ema.1} parent=27 // pred_check
          %p542 = pneg %p541
        $region38: #{vector_quantizer_ema.1} parent=27 // pred_check_branch
          %544 = sbr.rel (%p542) target = $region40
        $region39: #{vector_quantizer_ema.1} parent=27 // pred_region
          %v545 = vld [vmem:[#allocation2] sm:$0x1]
          %v546 = vrcp.pop 256.0
          %v547 = vmul.f32 %v545, %v546
          %v548 = vmul.f32 %v547, 0.25
          %v549 = vld [vmem:[#allocation3] sm:$0x1]
          %v550 = vrcp.pop 32.0
          %v551 = vmul.f32 %v549, %v550
          %v552 = vadd.f32 %v551, 1e-10
          %v553 = vlog2.pop %v552
          %v554 = vmul.f32 %v553, 0.6931472
          %v555 = vmul.f32 %v551, %v554
          %v556 = vsel %vm539, %v555, 0.0
          %557 = vadd.xlane.f32.xlu0 %v556
          %v558 = vpop.xlane.xlu0 %557
          %v559 = vsub.f32 0.0, %v558
          %v560 = vmul.f32 %v559, 1.442695
          %v561 = vpow.pop %v560
          %vm562 = vcmp.eq.s32.totalorder %v405, 0
          %564 = vset.pattern.permute.xlu0 0
          %565 = vperm.xlu0 %564, %v548
          %v566 = vpop.permute.xlu0 %565
          %v568 = vlaneseq
          %v569 = vshrl.u32 %v568, 7
          %v570 = vsub.s32 0, %v569
          %v571 = vrot.slane %v566, %v570
          %v572 = vsel %vm562, %v571, %v561
          %vm573 = vcmask 8192
          %574 = vst.msk [vmem:[%s4] sm:$0x1] %vm573, %v572
        $region40: #{vector_quantizer_ema.1} parent=27 // pred_fallthru
          _
        %s575 = sand.u32 %s77, 1
        %s576 = scalar_lea.sflag [#allocation6], %s575
        %s577 = sand.u32 %s77, 1
        %s578 = smul.addr %s577, 8
        %s579 = scalar_lea.vmem [#allocation7], %s578
        %p580 = scmp.lt.s32.totalorder %s22, 3
        %s581 = scalar_select %p580, %s22, 3
        %s582 = smul.addr %s581, 8
        %s583 = scalar_lea.vmem %s3, %s582
        // Predicated region
        $region41: #{vector_quantizer_ema.1} parent=27 // pred_check
          %p584 = pneg %p87
        $region42: #{vector_quantizer_ema.1} parent=27 // pred_check_branch
          %586 = sbr.rel (%p584) target = $region44
        $region43: #{vector_quantizer_ema.1} parent=27 // pred_region
          %s588 = ssub.s32 128, 128
          %589 = vsyncadd %s576, %s588
          %s590 = smul.addr %s22, 128
          %s591 = scalar_lea.hbm %s2, %s590
          %s593 = sshll.u32 %s579, 4
          %s594 = int_to_ptr.vmem [resolvable:$true] %s593
          %596 = dma.vmem_to_hbm [thread:$0]  %s594, 128, %s591, %s576
        $region44: #{vector_quantizer_ema.1} parent=27 // pred_fallthru
          _
        // Predicated region
        $region45: #{vector_quantizer_ema.1} parent=27 // pred_check
          %p597 = pneg %p113
        $region46: #{vector_quantizer_ema.1} parent=27 // pred_check_branch
          %599 = sbr.rel (%p597) target = $region48
        $region47: #{vector_quantizer_ema.1} parent=27 // pred_region
          _
        $region48: #{vector_quantizer_ema.1} parent=27 // pred_fallthru
          _
        // Predicated region
        $region49: #{vector_quantizer_ema.1} parent=27 // pred_check
          %p600 = pneg %p134
        $region50: #{vector_quantizer_ema.1} parent=27 // pred_check_branch
          %602 = sbr.rel (%p600) target = $region52
        $region51: #{vector_quantizer_ema.1} parent=27 // pred_region
          _
        $region52: #{vector_quantizer_ema.1} parent=27 // pred_fallthru
          _
        // Predicated region
        $region53: #{vector_quantizer_ema.1} parent=27 // pred_check
          %p603 = pneg %p134
        $region54: #{vector_quantizer_ema.1} parent=27 // pred_check_branch
          %605 = sbr.rel (%p603) target = $region56
        $region55: #{vector_quantizer_ema.1} parent=27 // pred_region
          _
        $region56: #{vector_quantizer_ema.1} parent=27 // pred_fallthru
          _
      $region28: #{vector_quantizer_ema.1} parent=5 // pred_fallthru
        _
      %p606 = scmp.le.s32.totalorder 2, %s17
      // Predicated region
      $region57: #{vector_quantizer_ema.1} parent=5 // pred_check
        %p607 = pneg %p606
      $region58: #{vector_quantizer_ema.1} parent=5 // pred_check_branch
        %609 = sbr.rel (%p607) target = $region60
      $region59: #{vector_quantizer_ema.1} parent=5 // pred_region
        %s610 = ssub.s32 %s17, 2
        // Predicated region
        $region61: #{vector_quantizer_ema.1} parent=59 // pred_check
          %p611 = pneg %p93
        $region62: #{vector_quantizer_ema.1} parent=59 // pred_check_branch
          %613 = sbr.rel (%p611) target = $region64
        $region63: #{vector_quantizer_ema.1} parent=59 // pred_region
          %s614 = sand.u32 %s78, 1
          %s615 = scalar_lea.sflag [#allocation6], %s614
          %s616 = sand.u32 %s78, 1
          %s617 = smul.addr %s616, 8
          %s618 = scalar_lea.vmem [#allocation7], %s617
          %619 = dma.done %s615, 128
        $region64: #{vector_quantizer_ema.1} parent=59 // pred_fallthru
          _
        // Predicated region
        $region65: #{vector_quantizer_ema.1} parent=59 // pred_check
          %p620 = pneg %p119
        $region66: #{vector_quantizer_ema.1} parent=59 // pred_check_branch
          %622 = sbr.rel (%p620) target = $region68
        $region67: #{vector_quantizer_ema.1} parent=59 // pred_region
          %p623 = scmp.lt.s32.totalorder %s23, 3
          %s624 = scalar_select %p623, %s23, 3
          %s625 = smul.addr %s624, 8
          %s626 = scalar_lea.vmem %s3, %s625
        $region68: #{vector_quantizer_ema.1} parent=59 // pred_fallthru
          _
      $region60: #{vector_quantizer_ema.1} parent=5 // pred_fallthru
        _
    $region6: #{vector_quantizer_ema.1} parent=1 // loop_footer
      %s21 = sadd.s32 1, %s17
    $region7: #{vector_quantizer_ema.1} parent=1 // loop_footer_branch
      %16 = sbr.rel target = $region3
    $region8: #{vector_quantizer_ema.1} parent=1 // loop_exit
      _
    %627 = vsyncpa [#allocation5], 1
    %s628 = scalar_lea.sflag [#allocation5], 1
    %629 = vsyncpa %s628, 1
    %630 = vsyncpa [#allocation6], 1
    %s631 = scalar_lea.sflag [#allocation6], 1
    %632 = vsyncpa %s631, 1

</llo_original>
